<compile_context>
chip_gen: v7x
topology: tpu7x:2x2x1
jax: 0.10.0
libtpu: 0.0.40
codegen_flags: <defaults>
</compile_context>

<pallas_src>
import math
from functools import partial

import jax
import jax.numpy as jnp
from jax.experimental import pallas as pl
from jax.experimental.pallas import tpu as pltpu

EPS_NORM = 1e-12                       # F.normalize default eps
VMEM_LIMIT = 48 * 1024 * 1024          # safe on v5e/v6e (128 MiB) and v7x (64 MiB)

_WHOLE_VMEM = lambda: pl.BlockSpec(memory_space=pltpu.MemorySpace.VMEM)


def _pick_tile(dim, pref=512):
    """Largest multiple-of-128 tile <= pref that divides dim, else the full dim."""
    if dim <= pref or dim % 128 != 0:
        return dim
    for t in range(pref, 127, -128):
        if dim % t == 0:
            return t
    return dim


def _l2_normalize_dim1(x):
    # F.normalize(x, p=2, dim=1, eps=1e-12) == x / max(||x||_2, eps) over tokens.
    # rsqrt(max(ss, eps^2)) == 1 / max(sqrt(ss), eps); rsqrt runs on the EUP.
    ss = jnp.sum(x * x, axis=1, keepdims=True)
    return x * jax.lax.rsqrt(jnp.maximum(ss, jnp.float32(EPS_NORM * EPS_NORM)))


# ----------------------------------------------------------------------------
# Kernel 1: word embedding (Linear) + positional encoding add
# grid = (F // tf, V // tv); vocab contraction is the last ("arbitrary") axis,
# accumulated in an f32 VMEM scratch; bias + pe added at the final step.
# ----------------------------------------------------------------------------
def embed_kernel(x_ref, w_ref, b_ref, pe_ref, o_ref, acc_ref):
    j = pl.program_id(1)                       # vocab-contraction step

    @pl.when(j == 0)
    def _():
        acc_ref[...] = jnp.zeros_like(acc_ref)

    B, T, tv = x_ref.shape
    x2 = x_ref[...].reshape(B * T, tv).astype(jnp.bfloat16)
    acc_ref[...] += jnp.dot(
        x2, w_ref[...], preferred_element_type=jnp.float32).reshape(acc_ref.shape)

    @pl.when(j == pl.num_programs(1) - 1)
    def _():
        # bias (1, tf) and pe (B, 1, tf) broadcast over (B, T, tf)
        o_ref[...] = acc_ref[...] + b_ref[...] + pe_ref[...]


def run_embed(x, w_emb_bf16, b_emb, pe_slice):
    B, T, V = x.shape
    F = w_emb_bf16.shape[1]
    tf = _pick_tile(F)
    tv = _pick_tile(V)
    grid = (F // tf, V // tv)
    return pl.pallas_call(
        embed_kernel,
        out_shape=jax.ShapeDtypeStruct((B, T, F), jnp.float32),
        grid_spec=pltpu.PrefetchScalarGridSpec(
            num_scalar_prefetch=0,
            grid=grid,
            in_specs=[
                pl.BlockSpec((B, T, tv), lambda i, j: (0, 0, j)),
                pl.BlockSpec((tv, tf), lambda i, j: (j, i)),
                pl.BlockSpec((1, tf), lambda i, j: (0, i)),
                pl.BlockSpec((B, 1, tf), lambda i, j: (0, 0, i)),
            ],
            out_specs=pl.BlockSpec((B, T, tf), lambda i, j: (0, 0, i)),
            scratch_shapes=[pltpu.VMEM((B, T, tf), jnp.float32)],
        ),
        compiler_params=pltpu.CompilerParams(
            dimension_semantics=("parallel", "arbitrary"),
            vmem_limit_bytes=VMEM_LIMIT),
    )(x, w_emb_bf16, b_emb, pe_slice)


# ----------------------------------------------------------------------------
# Kernel 2: ALL nblocks GPT3 blocks fused in one kernel (shared weights).
#   attention (softmax over batch dim) + residual + L2-normalize(dim=1)
#   + proj1 + residual + proj1 + L2-normalize(dim=1), repeated nblocks times.
# ----------------------------------------------------------------------------
def blocks_kernel(h_ref, wqkv_ref, bqkv_ref, wp_ref, bp_ref, w1_ref, b1_ref,
                  o_ref, *, nblocks, attn_dim):
    B, T, F = h_ref.shape
    BT = B * T
    A = attn_dim

    # Weights are DMA'd once per forward (bf16); biases broadcast once, hoisted
    # out of the per-block loop (JAX does not CSE broadcast_in_dim).
    w_qkv = wqkv_ref[...]
    w_p = wp_ref[...]
    w_1 = w1_ref[...]
    b_qkv = jnp.broadcast_to(bqkv_ref[...], (BT, 3 * A))
    b_p = jnp.broadcast_to(bp_ref[...], (BT, F))
    b_1 = jnp.broadcast_to(b1_ref[...], (BT, F))

    def one_block(_, h):                          # h: (B, T, F) f32
        x2 = h.reshape(BT, F).astype(jnp.bfloat16)
        qkv = jnp.dot(x2, w_qkv, preferred_element_type=jnp.float32) + b_qkv
        q = qkv[:, 0 * A:1 * A].reshape(B, T, A).astype(jnp.bfloat16)
        k = qkv[:, 1 * A:2 * A].reshape(B, T, A).astype(jnp.bfloat16)
        v = qkv[:, 2 * A:3 * A].reshape(B, T, A).astype(jnp.bfloat16)

        # dots = bmm(Q, K^T): (B, T, T); softmax over the BATCH dim (reference quirk)
        dots = jnp.einsum('bta,bsa->bts', q, k, preferred_element_type=jnp.float32)
        m = jnp.max(dots, axis=0, keepdims=True)
        e = jnp.exp(dots - m)
        attn = e * pl.reciprocal(jnp.sum(e, axis=0, keepdims=True), approx=True)

        ctx = jnp.einsum('bts,bsa->bta', attn.astype(jnp.bfloat16), v,
                         preferred_element_type=jnp.float32)
        attn_out = (jnp.dot(ctx.reshape(BT, A).astype(jnp.bfloat16), w_p,
                            preferred_element_type=jnp.float32) + b_p).reshape(B, T, F)

        res1 = h + attn_out
        norm1 = _l2_normalize_dim1(res1)

        proj1 = (jnp.dot(norm1.reshape(BT, F).astype(jnp.bfloat16), w_1,
                         preferred_element_type=jnp.float32) + b_1).reshape(B, T, F)
        res2 = norm1 + proj1
        tmp = (jnp.dot(res2.reshape(BT, F).astype(jnp.bfloat16), w_1,
                       preferred_element_type=jnp.float32) + b_1).reshape(B, T, F)
        return _l2_normalize_dim1(tmp)

    o_ref[...] = jax.lax.fori_loop(0, nblocks, one_block, h_ref[...])


def run_blocks(h, w_qkv, b_qkv, wp, bp, w1, b1, nblocks, attn_dim):
    return pl.pallas_call(
        partial(blocks_kernel, nblocks=nblocks, attn_dim=attn_dim),
        out_shape=jax.ShapeDtypeStruct(h.shape, jnp.float32),
        in_specs=[_WHOLE_VMEM()] * 7,
        out_specs=_WHOLE_VMEM(),
        compiler_params=pltpu.CompilerParams(vmem_limit_bytes=VMEM_LIMIT),
    )(h, w_qkv, b_qkv, wp, bp, w1, b1)


# ----------------------------------------------------------------------------
# Kernel 3: output projection + top-k over the token dim (dim=1), values only.
# Tiled over vocab columns (independent per column -> "parallel" grid axis).
# The kernel writes rows of shape (B, tv) into an output laid out (k, B, V);
# the wrapper transposes to (B, k, V) so the in-kernel store stays lane-dense
# and the dynamic per-iteration write is on the leading axis.
# ----------------------------------------------------------------------------
def head_kernel(x_ref, w_ref, b_ref, o_ref, *, k):
    B, T, F = x_ref.shape
    tv = w_ref.shape[1]
    x2 = x_ref[...].reshape(B * T, F).astype(jnp.bfloat16)
    logits = (jnp.dot(x2, w_ref[...], preferred_element_type=jnp.float32)
              + b_ref[...]).reshape(B, T, tv)
    iota_t = jax.lax.broadcasted_iota(jnp.int32, (B, T, tv), 1)
    neg_inf = jnp.float32(-jnp.inf)

    # Iterative top-k over tokens: descending values, first-occurrence removal.
    # NOTE: if k > T the extra rows are -inf (torch.topk would raise instead).
    def body(i, work):
        m = jnp.max(work, axis=1)                               # (B, tv)
        o_ref[i] = m
        is_max = work == m[:, None, :]
        first = jnp.min(jnp.where(is_max, iota_t, T), axis=1)   # (B, tv)
        return jnp.where(iota_t == first[:, None, :], neg_inf, work)

    jax.lax.fori_loop(0, k, body, logits)


def run_head(x, w_out_bf16, b_out, k):
    B, T, F = x.shape
    V = w_out_bf16.shape[1]
    tv = _pick_tile(V)
    grid = (V // tv,)
    out_kbv = pl.pallas_call(
        partial(head_kernel, k=k),
        out_shape=jax.ShapeDtypeStruct((k, B, V), jnp.float32),
        grid_spec=pltpu.PrefetchScalarGridSpec(
            num_scalar_prefetch=0,
            grid=grid,
            in_specs=[
                pl.BlockSpec((B, T, F), lambda j: (0, 0, 0)),
                pl.BlockSpec((F, tv), lambda j: (0, j)),
                pl.BlockSpec((1, tv), lambda j: (0, j)),
            ],
            out_specs=pl.BlockSpec((k, B, tv), lambda j: (0, 0, j)),
        ),
        compiler_params=pltpu.CompilerParams(
            dimension_semantics=("parallel",),
            vmem_limit_bytes=VMEM_LIMIT),
    )(x, w_out_bf16, b_out)
    return jnp.transpose(out_kbv, (1, 0, 2))      # (B, k, V)


# ----------------------------------------------------------------------------
# Parameter construction (deterministic, mirrors nn.Linear default init)
# ----------------------------------------------------------------------------
def init_linear(key, in_f, out_f):
    kw, kb = jax.random.split(key)
    bound = 1.0 / math.sqrt(in_f)
    w = jax.random.uniform(kw, (in_f, out_f), jnp.float32, -bound, bound)  # (in, out)
    b = jax.random.uniform(kb, (1, out_f), jnp.float32, -bound, bound)
    return w, b


def make_pe(features, max_len=12288):
    position = jnp.arange(max_len, dtype=jnp.float32)[:, None]
    div_term = jnp.exp(jnp.arange(0, features, 2, dtype=jnp.float32)
                       * (-math.log(10000.0) / features))
    pe = jnp.zeros((max_len, 1, features), jnp.float32)
    pe = pe.at[:, 0, 0::2].set(jnp.sin(position * div_term))
    pe = pe.at[:, 0, 1::2].set(jnp.cos(position * div_term))
    return pe


def init_gpt3_params(key, vocabsize, features, attn_dim=128):
    keys = jax.random.split(key, 6)
    p = {}
    p['w_emb'], p['b_emb'] = init_linear(keys[0], vocabsize, features)
    p['wq'], p['bq'] = init_linear(keys[1], features, attn_dim)
    p['wk'], p['bk'] = init_linear(keys[2], features, attn_dim)
    p['wv'], p['bv'] = init_linear(keys[3], features, attn_dim)
    p['wp'], p['bp'] = init_linear(keys[4], attn_dim, features)
    p['w1'], p['b1'] = init_linear(keys[5], features, features)
    p['w_out'], p['b_out'] = init_linear(jax.random.fold_in(key, 99),
                                         features, vocabsize)
    p['pe'] = make_pe(features)
    return p


def gpt3_forward(params, x, nblocks, k, attn_dim=128):
    B = x.shape[0]
    pe_slice = params['pe'][:B]                   # (B, 1, F) -- reference quirk

    # One-time weight prep: QKV fusion + bf16 cast (MXU inputs); biases stay f32.
    w_emb_bf = params['w_emb'].astype(jnp.bfloat16)
    w_qkv = jnp.concatenate([params['wq'], params['wk'], params['wv']],
                            axis=1).astype(jnp.bfloat16)          # (F, 3A)
    b_qkv = jnp.concatenate([params['bq'], params['bk'], params['bv']], axis=1)
    w_p = params['wp'].astype(jnp.bfloat16)
    w_1 = params['w1'].astype(jnp.bfloat16)
    w_out_bf = params['w_out'].astype(jnp.bfloat16)

    h = run_embed(x, w_emb_bf, params['b_emb'], pe_slice)
    h = run_blocks(h, w_qkv, b_qkv, w_p, params['bp'], w_1, params['b1'],
                   nblocks, attn_dim)
    return run_head(h, w_out_bf, params['b_out'], k)


# ----------------------------------------------------------------------------
if __name__ == "__main__":
    # Small shapes consistent with the module: x is (batch, ntokens, vocabsize).
    B, T, VOCAB, FEAT = 2, 8, 32, 32
    NBLOCKS, K = 2, 4          # nblocks=96, k=100 in the reference defaults; kept small here

    key = jax.random.PRNGKey(0)
    kp, kx = jax.random.split(key)
    params = init_gpt3_params(kp, VOCAB, FEAT)
    x = jax.random.uniform(kx, (B, T, VOCAB), jnp.float32)

    out = gpt3_forward(params, x, NBLOCKS, K)
    out = jax.block_until_ready(out)
    assert out.shape == (B, K, VOCAB), out.shape
    assert bool(jnp.all(jnp.isfinite(out)))
    print("KERNEL_OK")
</pallas_src>

<mosaic_0001>
module attributes {stable_mosaic.version = 11 : i64} {
  func.func @embed_kernel(%arg0: i32, %arg1: i32, %arg2: memref<2x8x32xf32, #tpu.memory_space<vmem>>, %arg3: memref<32x32xbf16, #tpu.memory_space<vmem>>, %arg4: memref<1x32xf32, #tpu.memory_space<vmem>>, %arg5: memref<2x1x32xf32, #tpu.memory_space<vmem>>, %arg6: memref<2x8x32xf32, #tpu.memory_space<vmem>>, %arg7: memref<2x8x32xf32, #tpu.memory_space<vmem>>) attributes {dimension_semantics = [#tpu.dimension_semantics<parallel>, #tpu.dimension_semantics<arbitrary>], iteration_bounds = array<i64: 1, 1>, scalar_prefetch = 0 : i64, scratch_operands = 1 : i64, tpu.core_type = #tpu.core_type<tc>, window_params = [{transform_indices = @transform_0, window_bounds = array<i64: 2, 8, 32>}, {transform_indices = @transform_1, window_bounds = array<i64: 32, 32>}, {transform_indices = @transform_2, window_bounds = array<i64: 1, 32>}, {transform_indices = @transform_3, window_bounds = array<i64: 2, 1, 32>}, {transform_indices = @transform_4, window_bounds = array<i64: 2, 8, 32>}]} {
    %c0_i32 = arith.constant 0 : i32
    %0 = arith.cmpi eq, %arg1, %c0_i32 : i32
    %1 = arith.extui %0 : i1 to i32
    %c0_i32_0 = arith.constant 0 : i32
    %2 = arith.cmpi ne, %1, %c0_i32_0 : i32
    scf.if %2 {
      %cst_13 = arith.constant 0.000000e+00 : f32
      %15 = vector.broadcast %cst_13 : f32 to vector<2x8x32xf32>
      %c0_14 = arith.constant 0 : index
      %c0_15 = arith.constant 0 : index
      %c0_16 = arith.constant 0 : index
      %16 = vector.load %arg7[%c0_14, %c0_15, %c0_16] : memref<2x8x32xf32, #tpu.memory_space<vmem>>, vector<2x8x32xf32>
      tpu.vector_store %arg7[%c0_14, %c0_15, %c0_16], %15 {strides = array<i32>} : memref<2x8x32xf32, #tpu.memory_space<vmem>>, vector<2x8x32xf32>,
    } else {
    }
    %c0 = arith.constant 0 : index
    %c0_1 = arith.constant 0 : index
    %c0_2 = arith.constant 0 : index
    %3 = vector.load %arg2[%c0, %c0_1, %c0_2] : memref<2x8x32xf32, #tpu.memory_space<vmem>>, vector<2x8x32xf32>
    %4 = vector.shape_cast %3 : vector<2x8x32xf32> to vector<16x32xf32>
    %5 = arith.truncf %4 : vector<16x32xf32> to vector<16x32xbf16>
    %c0_3 = arith.constant 0 : index
    %c0_4 = arith.constant 0 : index
    %c0_5 = arith.constant 0 : index
    %6 = vector.load %arg7[%c0_3, %c0_4, %c0_5] : memref<2x8x32xf32, #tpu.memory_space<vmem>>, vector<2x8x32xf32>
    %c0_6 = arith.constant 0 : index
    %c0_7 = arith.constant 0 : index
    %7 = vector.load %arg3[%c0_6, %c0_7] : memref<32x32xbf16, #tpu.memory_space<vmem>>, vector<32x32xbf16>
    %cst = arith.constant dense<0.000000e+00> : vector<16x32xf32>
    %8 = tpu.matmul %5, %7, %cst {dimension_numbers = #tpu.dot_dimension_numbers<[1], [0], [0], [1], [0, 0, 1, 1], [], []>} : vector<16x32xbf16>, vector<32x32xbf16>, vector<16x32xf32> -> vector<16x32xf32>
    %9 = vector.shape_cast %8 : vector<16x32xf32> to vector<2x8x32xf32>
    %10 = arith.addf %6, %9 : vector<2x8x32xf32>
    %c0_8 = arith.constant 0 : index
    %c0_9 = arith.constant 0 : index
    %c0_10 = arith.constant 0 : index
    %11 = vector.load %arg7[%c0_8, %c0_9, %c0_10] : memref<2x8x32xf32, #tpu.memory_space<vmem>>, vector<2x8x32xf32>
    tpu.vector_store %arg7[%c0_8, %c0_9, %c0_10], %10 {strides = array<i32>} : memref<2x8x32xf32, #tpu.memory_space<vmem>>, vector<2x8x32xf32>,
    %c0_i32_11 = arith.constant 0 : i32
    %12 = arith.cmpi eq, %arg1, %c0_i32_11 : i32
    %13 = arith.extui %12 : i1 to i32
    %c0_i32_12 = arith.constant 0 : i32
    %14 = arith.cmpi ne, %13, %c0_i32_12 : i32
    scf.if %14 {
      %c0_13 = arith.constant 0 : index
      %c0_14 = arith.constant 0 : index
      %c0_15 = arith.constant 0 : index
      %15 = vector.load %arg7[%c0_13, %c0_14, %c0_15] : memref<2x8x32xf32, #tpu.memory_space<vmem>>, vector<2x8x32xf32>
      %c0_16 = arith.constant 0 : index
      %c0_17 = arith.constant 0 : index
      %16 = vector.load %arg4[%c0_16, %c0_17] : memref<1x32xf32, #tpu.memory_space<vmem>>, vector<1x32xf32>
      %17 = vector.shape_cast %16 : vector<1x32xf32> to vector<1x1x32xf32>
      %18 = vector.broadcast %17 : vector<1x1x32xf32> to vector<2x8x32xf32>
      %19 = arith.addf %15, %18 : vector<2x8x32xf32>
      %c0_18 = arith.constant 0 : index
      %c0_19 = arith.constant 0 : index
      %c0_20 = arith.constant 0 : index
      %20 = vector.load %arg5[%c0_18, %c0_19, %c0_20] : memref<2x1x32xf32, #tpu.memory_space<vmem>>, vector<2x1x32xf32>
      %21 = vector.broadcast %20 : vector<2x1x32xf32> to vector<2x8x32xf32>
      %22 = arith.addf %19, %21 : vector<2x8x32xf32>
      %c0_21 = arith.constant 0 : index
      %c0_22 = arith.constant 0 : index
      %c0_23 = arith.constant 0 : index
      %23 = vector.load %arg6[%c0_21, %c0_22, %c0_23] : memref<2x8x32xf32, #tpu.memory_space<vmem>>, vector<2x8x32xf32>
      tpu.vector_store %arg6[%c0_21, %c0_22, %c0_23], %22 {strides = array<i32>} : memref<2x8x32xf32, #tpu.memory_space<vmem>>, vector<2x8x32xf32>,
    } else {
    }
    return
  }
  func.func @transform_0(%arg0: i32, %arg1: i32) -> (i32, i32, i32) {
    %c0_i32 = arith.constant 0 : i32
    %c0_i32_0 = arith.constant 0 : i32
    %c0_i32_1 = arith.constant 0 : i32
    return %c0_i32, %c0_i32_0, %arg1 : i32, i32, i32
  }
  func.func @transform_1(%arg0: i32, %arg1: i32) -> (i32, i32) {
    %c0_i32 = arith.constant 0 : i32
    return %arg1, %arg0 : i32, i32
  }
  func.func @transform_2(%arg0: i32, %arg1: i32) -> (i32, i32) {
    %c0_i32 = arith.constant 0 : i32
    %c0_i32_0 = arith.constant 0 : i32
    return %c0_i32, %arg0 : i32, i32
  }
  func.func @transform_3(%arg0: i32, %arg1: i32) -> (i32, i32, i32) {
    %c0_i32 = arith.constant 0 : i32
    %c0_i32_0 = arith.constant 0 : i32
    %c0_i32_1 = arith.constant 0 : i32
    return %c0_i32, %c0_i32_0, %arg0 : i32, i32, i32
  }
  func.func @transform_4(%arg0: i32, %arg1: i32) -> (i32, i32, i32) {
    %c0_i32 = arith.constant 0 : i32
    %c0_i32_0 = arith.constant 0 : i32
    %c0_i32_1 = arith.constant 0 : i32
    return %c0_i32, %c0_i32_0, %arg0 : i32, i32, i32
  }
}

</mosaic_0001>

<llo_original>
// kernel: tpu_custom_call.1
$region0: #{tpu_custom_call.1}
  #allocation0 [shape = 'u32[]', space=smem, size = 0x4, offset = 0x4, fixed_abs, tag = 'smem constant byte address 0x4 - core index']
  #allocation1 [shape = 'u32[144,128]{1,0:T(1,128)}', space=vmem, size = 0x12000, scoped, tag = 'internal scratch']
  #allocation2 [shape = 'f32[2,8,32]{2,1,0:T(8,128)}', space=vmem, size = 0x2000, scoped, tag = 'scratch operand']
  %s0 = inlined_call_operand.hbm [shape: f32[2,8,32], index: 0, kind: input, shape index: {}]
  %s1 = inlined_call_operand.hbm [shape: bf16[32,32], index: 1, kind: input, shape index: {}]
  %s2 = inlined_call_operand.vmem [shape: f32[1,32], index: 2, kind: input, shape index: {}]
  %s3 = inlined_call_operand.vmem [shape: f32[2,1,32], index: 3, kind: input, shape index: {}]
  %s4 = inlined_call_operand.hbm [shape: f32[2,8,32], index: 4, kind: output, shape index: {}]
  %s5 = sld [smem:[#allocation0]]
  $region42: #{tpu_custom_call.1} parent=0
    _
  %s7 = ssub.s32 1, %s5
  %s8 = scalar_select 0, %s7, %s5
  $region1: #{tpu_custom_call.1} parent=0
    #allocation3 [shape = 'u8[8192]{0}', space=vmem, size = 0x2000, scoped, tag = 'input window, operand 0, single buffered']
    #allocation4 [shape = 's32[1]{0}', space=sflag, size = 0x4, scoped, tag = 'scoped memory for tpu_custom_call.1']
    #allocation5 [shape = 's32[1]{0}', space=sflag, size = 0x4, scoped, tag = 'scoped memory for tpu_custom_call.1']
    #allocation6 [shape = 'u8[8192]{0}', space=vmem, size = 0x2000, scoped, tag = 'input window, operand 1, single buffered']
    #allocation7 [shape = 's32[1]{0}', space=sflag, size = 0x4, scoped, tag = 'scoped memory for tpu_custom_call.1']
    #allocation8 [shape = 'u8[8192]{0}', space=vmem, size = 0x2000, scoped, tag = 'output window, operand 0, single buffered']
    %9 = vsyncpa [#allocation4], 0
    %10 = vsyncpa [#allocation7], 0
    %11 = vsyncpa [#allocation5], 0
    // Predicated region
    $region2: #{tpu_custom_call.1} parent=1 // pred_check
      _
    $region3: #{tpu_custom_call.1} parent=1 // pred_check_branch
      %13 = sbr.rel (0) target = $region5
    $region4: #{tpu_custom_call.1} parent=1 // pred_region
      %s15 = ssub.s32 256, 256
      %16 = vsyncadd [#allocation4], %s15
      %s17 = sshll.u32 [#allocation3], 4
      %s18 = int_to_ptr.vmem [resolvable:$true] %s17
      %23 = dma.hbm_to_vmem [thread:$0]  %s0, 256, %s18, [#allocation4], 128, 128, 8
    $region5: #{tpu_custom_call.1} parent=1 // pred_fallthru
      _
    // Predicated region
    $region6: #{tpu_custom_call.1} parent=1 // pred_check
      _
    $region7: #{tpu_custom_call.1} parent=1 // pred_check_branch
      %25 = sbr.rel (0) target = $region9
    $region8: #{tpu_custom_call.1} parent=1 // pred_region
      %s27 = ssub.s32 256, 256
      %28 = vsyncadd [#allocation7], %s27
      %s29 = sshll.u32 [#allocation6], 4
      %s30 = int_to_ptr.vmem [resolvable:$true] %s29
      %35 = dma.hbm_to_vmem [thread:$0]  %s1, 256, %s30, [#allocation7], 64, 64, 4
    $region9: #{tpu_custom_call.1} parent=1 // pred_fallthru
      _
    // Predicated region
    $region10: #{tpu_custom_call.1} parent=1 // pred_check
      _
    $region11: #{tpu_custom_call.1} parent=1 // pred_check_branch
      %37 = sbr.rel (0) target = $region13
    $region12: #{tpu_custom_call.1} parent=1 // pred_region
      _
    $region13: #{tpu_custom_call.1} parent=1 // pred_fallthru
      _
    // Predicated region
    $region14: #{tpu_custom_call.1} parent=1 // pred_check
      _
    $region15: #{tpu_custom_call.1} parent=1 // pred_check_branch
      %39 = sbr.rel (0) target = $region17
    $region16: #{tpu_custom_call.1} parent=1 // pred_region
      _
    $region17: #{tpu_custom_call.1} parent=1 // pred_fallthru
      _
    // Predicated region
    $region18: #{tpu_custom_call.1} parent=1 // pred_check
      _
    $region19: #{tpu_custom_call.1} parent=1 // pred_check_branch
      %41 = sbr.rel (0) target = $region21
    $region20: #{tpu_custom_call.1} parent=1 // pred_region
      %42 = dma.done [#allocation4], 256
    $region21: #{tpu_custom_call.1} parent=1 // pred_fallthru
      _
    // Predicated region
    $region22: #{tpu_custom_call.1} parent=1 // pred_check
      _
    $region23: #{tpu_custom_call.1} parent=1 // pred_check_branch
      %44 = sbr.rel (0) target = $region25
    $region24: #{tpu_custom_call.1} parent=1 // pred_region
      %45 = dma.done [#allocation7], 256
    $region25: #{tpu_custom_call.1} parent=1 // pred_fallthru
      _
    %p47 = scmp.eq.s32.totalorder 0, 0
    // Predicated region
    $region26: #{tpu_custom_call.1} parent=1 // pred_check
      %p48 = pneg %p47
    $region27: #{tpu_custom_call.1} parent=1 // pred_check_branch
      %50 = sbr.rel (%p48) target = $region29
    $region28: #{tpu_custom_call.1} parent=1 // pred_region
      %vm51 = vcmask 261120
      %52 = vst.msk [vmem:[#allocation2] sm:$0xff] %vm51, 0.0
      %53 = vst.msk [vmem:[#allocation2 + $0x8] sm:$0xff] %vm51, 0.0
    $region29: #{tpu_custom_call.1} parent=1 // pred_fallthru
      _
    %v54 = vld [vmem:[#allocation3] sm:$0xff]
    %v55 = vld [vmem:[#allocation3 + $0x8] sm:$0xff]
    %v56 = vpack.c.bf16 %v55, %v54
    %v57 = vld [vmem:[#allocation2] sm:$0xff]
    %v58 = vld [vmem:[#allocation2 + $0x8] sm:$0xff]
    %v59 = vld [vmem:[#allocation6] sm:$0xf]
    %v60 = vld [vmem:[#allocation6 + $0x4] sm:$0xf]
    %v61 = vld [vmem:[#allocation6 + $0x8] sm:$0xf]
    %v62 = vld [vmem:[#allocation6 + $0xc] sm:$0xf]
    %v67 = vunpack.c.l.b16 %v59
    %v68 = vunpack.c.l.b16 %v60
    %v69 = vunpack.c.l.b16 %v61
    %v70 = vunpack.c.l.b16 %v62
    %v71 = vpack.c.b16 %v68, %v67
    %v72 = vpack.c.b16 %v70, %v69
    %vm75 = vcmask 261120
    %v77 = vsel %vm75, %v56, 0
    %79 = vmatprep.subr.bf16.mxu0 0
    %80 = vmatpush1.bf16.msra.mxu0 %v71
    %81 = vmatprep.subr.bf16.mxu0 0
    %82 = vmatpush1.bf16.msra.mxu0 %v72
    %83 = vmatprep.subr.bf16.mxu0 0
    %84 = vmatpush1.bf16.msra.mxu0 0
    %85 = vmatprep.subr.bf16.mxu0 0
    %86 = vmatpush1.bf16.msra.mxu0 0
    %87 = vmatprep.subr.bf16.mxu0 0
    %88 = vmatpush1.bf16.msra.mxu0 0
    %89 = vmatprep.subr.bf16.mxu0 0
    %90 = vmatpush1.bf16.msra.mxu0 0
    %91 = vmatprep.subr.bf16.mxu0 0
    %92 = vmatpush1.bf16.msra.mxu0 0
    %93 = vmatprep.subr.bf16.mxu0 0
    %94 = vmatpush1.bf16.msra.mxu0 0
    %95 = vmatprep.subr.bf16.mxu0 0
    %96 = vmatpush1.bf16.msra.mxu0 0
    %97 = vmatprep.subr.bf16.mxu0 0
    %98 = vmatpush1.bf16.msra.mxu0 0
    %99 = vmatprep.subr.bf16.mxu0 0
    %100 = vmatpush1.bf16.msra.mxu0 0
    %101 = vmatprep.subr.bf16.mxu0 0
    %102 = vmatpush1.bf16.msra.mxu0 0
    %103 = vmatprep.subr.bf16.mxu0 0
    %104 = vmatpush1.bf16.msra.mxu0 0
    %105 = vmatprep.subr.bf16.mxu0 0
    %106 = vmatpush1.bf16.msra.mxu0 0
    %107 = vmatprep.subr.bf16.mxu0 0
    %108 = vmatpush1.bf16.msra.mxu0 0
    %109 = vmatprep.subr.bf16.mxu0 0
    %110 = vmatpush1.bf16.msra.mxu0 0
    %111 = vmatprep.mubr.bf16.mxu0 0
    %112 = vmatmul.mubr.bf16.gmra.mrb[0].mxu0 %v77
    %v113 = vpop.f32.mrb[0].mxu0
    %v114 = vadd.f32 0.0, %v113
    %v115 = vpop.f32.mrb[0].mxu0
    %v116 = vpop.f32.mrb[0].mxu0
    %v117 = vadd.f32 0.0, %v116
    %v118 = vpop.f32.mrb[0].mxu0
    %119 = vdwg.mxu0
    %v120 = vadd.f32 %v57, %v114
    %v121 = vadd.f32 %v58, %v117
    %122 = vst.msk [vmem:[#allocation2] sm:$0xff] %vm75, %v120
    %123 = vst.msk [vmem:[#allocation2 + $0x8] sm:$0xff] %vm75, %v121
    // Predicated region
    $region30: #{tpu_custom_call.1} parent=1 // pred_check
      %p124 = pneg %p47
    $region31: #{tpu_custom_call.1} parent=1 // pred_check_branch
      %126 = sbr.rel (%p124) target = $region33
    $region32: #{tpu_custom_call.1} parent=1 // pred_region
      %v127 = vld [vmem:[#allocation2] sm:$0xff]
      %v128 = vld [vmem:[#allocation2 + $0x8] sm:$0xff]
      %v129 = vld [vmem:[%s2] sm:$0x1]
      %v131 = vlaneseq
      %v132 = vshrl.u32 %v131, 7
      %v133 = vsub.s32 0, %v132
      %v134 = vrot.slane %v129, %v133
      %v136 = vadd.f32 %v127, %v134
      %v137 = vadd.f32 %v128, %v134
      %v138 = vld [vmem:[%s3] sm:$0x1]
      %v139 = vld [vmem:[%s3 + $0x1] sm:$0x1]
      %v142 = vlaneseq
      %v143 = vshrl.u32 %v142, 7
      %v144 = vsub.s32 0, %v143
      %v145 = vrot.slane %v138, %v144
      %v146 = vlaneseq
      %v147 = vshrl.u32 %v146, 7
      %v148 = vsub.s32 0, %v147
      %v149 = vrot.slane %v139, %v148
      %v152 = vadd.f32 %v136, %v145
      %v153 = vadd.f32 %v137, %v149
      %154 = vst.msk [vmem:[#allocation8] sm:$0xff] %vm75, %v152
      %155 = vst.msk [vmem:[#allocation8 + $0x8] sm:$0xff] %vm75, %v153
    $region33: #{tpu_custom_call.1} parent=1 // pred_fallthru
      _
    // Predicated region
    $region34: #{tpu_custom_call.1} parent=1 // pred_check
      _
    $region35: #{tpu_custom_call.1} parent=1 // pred_check_branch
      %157 = sbr.rel (0) target = $region37
    $region36: #{tpu_custom_call.1} parent=1 // pred_region
      %s159 = ssub.s32 256, 256
      %160 = vsyncadd [#allocation5], %s159
      %s161 = sshll.u32 [#allocation8], 4
      %s162 = int_to_ptr.vmem [resolvable:$true] %s161
      %167 = dma.vmem_to_hbm [thread:$0]  %s162, 256, %s4, [#allocation5], 128, 128, 8
    $region37: #{tpu_custom_call.1} parent=1 // pred_fallthru
      _
    // Predicated region
    $region38: #{tpu_custom_call.1} parent=1 // pred_check
      _
    $region39: #{tpu_custom_call.1} parent=1 // pred_check_branch
      %169 = sbr.rel (0) target = $region41
    $region40: #{tpu_custom_call.1} parent=1 // pred_region
      %170 = dma.done [#allocation5], 256
    $region41: #{tpu_custom_call.1} parent=1 // pred_fallthru
      _
    %171 = vsyncpa [#allocation4], 1
    %172 = vsyncpa [#allocation7], 1
    %173 = vsyncpa [#allocation5], 1

</llo_original>
